<compile_context>
chip_gen: v7x
topology: tpu7x:2x2x1
jax: 0.10.0
libtpu: 0.0.40
codegen_flags: <defaults>
</compile_context>

<pallas_src>
import functools
import math

import jax
import jax.numpy as jnp
from jax import lax
from jax.experimental import pallas as pl
from jax.experimental.pallas import tpu as pltpu

EPS = 1e-5
LANE = 128


def _round_up(x, m):
    return (x + m - 1) // m * m


# ---------------------------------------------------------------------------
# Fused kernel: whole MLP per batch-tile.
#   refs layout: x_ref, (w, aff) * n_layers, o_ref
#   aff has 2 rows (b*s, t) when BN scale was folded into W, else 3 rows (b, s, t).
# ---------------------------------------------------------------------------
def _fused_mlp_kernel(x_ref, *refs):
    o_ref = refs[-1]
    layer_refs = refs[:-1]
    n_layers = len(layer_refs) // 2

    h = x_ref[...]
    for l in range(n_layers):
        w_ref = layer_refs[2 * l]
        aff_ref = layer_refs[2 * l + 1]
        # Linear on the MXU: bf16 operands, f32 accumulation.
        z = jnp.dot(h.astype(jnp.bfloat16), w_ref[...],
                    preferred_element_type=jnp.float32)
        if aff_ref.shape[0] == 2:
            # BN scale already folded into W/b:  y = relu(z + b*s) + t
            h = jnp.maximum(z + aff_ref[0:1, :], 0.0) + aff_ref[1:2, :]
        else:
            # General (s may be <= 0):  y = relu(z + b) * s + t
            h = jnp.maximum(z + aff_ref[0:1, :], 0.0) * aff_ref[1:2, :] \
                + aff_ref[2:3, :]
    o_ref[...] = h.astype(o_ref.dtype)


# ---------------------------------------------------------------------------
# Wrapper
# ---------------------------------------------------------------------------
@jax.jit
def mlp_forward(x, fused_params):
    """x: (B, Fin) f32.  fused_params: tuple of (Wt_bf16, aff_f32) per layer.

    Wt_bf16: (Fin_pad, Fout_pad) pre-transposed / pre-scaled weight (bf16);
             the last layer's Fout is left unpadded (= out_features).
    aff_f32: (2 or 3, Fout_pad) folded bias / BN affine rows.
    Returns (B, out_features) f32.
    """
    B, Fin = x.shape
    out_dim = fused_params[-1][0].shape[1]   # last layer output width (unpadded)

    # Batch tiling: up to 512 rows per tile; for large B make sure the grid has
    # >= 2 steps so the "parallel" axis shards across v7x's two TensorCores.
    TB = _round_up(min(B, 512), 8)
    if B > 128 and pl.cdiv(B, TB) < 2:
        TB = _round_up(pl.cdiv(B, 2), 8)
    grid = (pl.cdiv(B, TB),)   # partial last block handled by Pallas (no jnp.pad)

    in_specs = [pl.BlockSpec((TB, Fin), lambda i: (i, 0))]
    flat_args = [x]
    flops = 0
    bytes_accessed = B * Fin * 4 + B * out_dim * 4
    for (wt, aff) in fused_params:
        fin_p, fout_p = wt.shape
        in_specs += [
            pl.BlockSpec((fin_p, fout_p), lambda i: (0, 0)),  # weight (resident)
            pl.BlockSpec(aff.shape, lambda i: (0, 0)),        # folded bias / BN affine
        ]
        flat_args += [wt, aff]
        flops += 2 * B * fin_p * fout_p + 2 * B * fout_p
        bytes_accessed += wt.size * wt.dtype.itemsize + aff.size * 4

    return pl.pallas_call(
        _fused_mlp_kernel,
        out_shape=jax.ShapeDtypeStruct((B, out_dim), jnp.float32),
        grid=grid,
        in_specs=in_specs,
        out_specs=pl.BlockSpec((TB, out_dim), lambda i: (i, 0)),
        compiler_params=pltpu.CompilerParams(
            dimension_semantics=("parallel",)),
        cost_estimate=pl.CostEstimate(
            flops=flops, transcendentals=0, bytes_accessed=bytes_accessed),
    )(*flat_args)


# ---------------------------------------------------------------------------
# Parameter construction (PyTorch-equivalent init) + one-time folding/padding
# ---------------------------------------------------------------------------
def init_linear(key, fan_in, fan_out):
    """nn.Linear default init: U(-1/sqrt(fan_in), 1/sqrt(fan_in))."""
    kw, kb = jax.random.split(key)
    bound = 1.0 / math.sqrt(fan_in)
    w = jax.random.uniform(kw, (fan_out, fan_in), jnp.float32, -bound, bound)
    b = jax.random.uniform(kb, (fan_out,), jnp.float32, -bound, bound)
    return w, b


def init_batchnorm(key, fnum):
    """Non-trivial BN params/stats so the folded BN path is actually exercised."""
    k1, k2, k3, k4 = jax.random.split(key, 4)
    gamma = jax.random.uniform(k1, (fnum,), jnp.float32, 0.5, 1.5)
    beta = 0.1 * jax.random.normal(k2, (fnum,), jnp.float32)
    running_mean = 0.1 * jax.random.normal(k3, (fnum,), jnp.float32)
    running_var = jax.random.uniform(k4, (fnum,), jnp.float32, 0.5, 2.0)
    return gamma, beta, running_mean, running_var


def build_mlp_params(key, input_feature, feature_num, output_feature):
    """PyTorch-layout parameters: [(W(Fout,Fin), b, gamma, beta, rmean, rvar), ...]."""
    params = []
    in_f = input_feature
    dims = list(feature_num) + [output_feature]
    keys = jax.random.split(key, 2 * len(dims))
    for n, fnum in enumerate(dims):
        w, b = init_linear(keys[2 * n], in_f, fnum)
        gamma, beta, rmean, rvar = init_batchnorm(keys[2 * n + 1], fnum)
        params.append((w, b, gamma, beta, rmean, rvar))
        in_f = fnum
    return params


def fold_params(params, input_feature):
    """One-time preprocessing:
       - transpose weights; hidden feature dims zero-padded to 128 lanes,
         last layer left unpadded (narrow output store),
       - fold eval-mode BN into the weight/bias when s > 0, else keep (b, s, t),
       - cast weights to bf16 (MXU-native)."""
    fused = []
    in_p = input_feature
    n_layers = len(params)
    for idx, (w, b, gamma, beta, rmean, rvar) in enumerate(params):
        fout, fin = w.shape
        last = idx == n_layers - 1
        fout_p = fout if last else _round_up(fout, LANE)

        s = gamma * lax.rsqrt(rvar + EPS)
        t = beta - rmean * s

        wt = jnp.zeros((in_p, fout_p), jnp.float32).at[:fin, :fout].set(w.T)

        if bool(jnp.all(s > 0)):
            # Exact fold (relu(z*s) == relu(z)*s when s > 0):
            #   y = relu(x @ (W^T * s) + b*s) + t
            s_pad = jnp.ones((fout_p,), jnp.float32).at[:fout].set(s)
            wt = wt * s_pad[None, :]
            aff = jnp.zeros((2, fout_p), jnp.float32)
            aff = aff.at[0, :fout].set(b * s)
            aff = aff.at[1, :fout].set(t)
        else:
            # General fallback: y = relu(x @ W^T + b) * s + t
            aff = jnp.zeros((3, fout_p), jnp.float32)
            aff = aff.at[0, :fout].set(b)
            aff = aff.at[1, :].set(1.0)
            aff = aff.at[1, :fout].set(s)
            aff = aff.at[2, :fout].set(t)

        fused.append((wt.astype(jnp.bfloat16), aff))
        in_p = fout_p
    return tuple(fused)


# ---------------------------------------------------------------------------
# Pure-JAX reference (unfolded, f32, PyTorch-style math) for correctness check
# ---------------------------------------------------------------------------
def mlp_forward_ref(x, params):
    h = x
    for (w, b, gamma, beta, rmean, rvar) in params:
        z = h @ w.T + b
        a = jnp.maximum(z, 0.0)
        h = (a - rmean) / jnp.sqrt(rvar + EPS) * gamma + beta
    return h


if __name__ == "__main__":
    key = jax.random.PRNGKey(0)
    k_params, k_x = jax.random.split(key)

    batch = 8
    input_feature = 32
    feature_num = [64, 64]
    dropout = [0.1, 0.1]   # identity in eval mode
    output_feature = 16

    params = build_mlp_params(k_params, input_feature, feature_num,
                              output_feature)
    fused_params = fold_params(params, input_feature)

    x = jax.random.normal(k_x, (batch, input_feature), jnp.float32)

    out = mlp_forward(x, fused_params)
    out = jax.block_until_ready(out)

    ref = mlp_forward_ref(x, params)
    assert out.shape == (batch, output_feature), out.shape
    # bf16 matmul operands -> compare against the f32 reference with a bf16-level
    # tolerance (accumulation is f32).
    assert jnp.allclose(out, ref, atol=5e-2, rtol=5e-2), \
        float(jnp.max(jnp.abs(out - ref)))

    print("KERNEL_OK")
</pallas_src>

<mosaic_0001>
module attributes {stable_mosaic.version = 11 : i64} {
  func.func @_fused_mlp_kernel(%arg0: i32, %arg1: memref<8x32xf32, #tpu.memory_space<vmem>>, %arg2: memref<32x128xbf16, #tpu.memory_space<vmem>>, %arg3: memref<2x128xf32, #tpu.memory_space<vmem>>, %arg4: memref<128x128xbf16, #tpu.memory_space<vmem>>, %arg5: memref<2x128xf32, #tpu.memory_space<vmem>>, %arg6: memref<128x16xbf16, #tpu.memory_space<vmem>>, %arg7: memref<2x16xf32, #tpu.memory_space<vmem>>, %arg8: memref<8x16xf32, #tpu.memory_space<vmem>>) attributes {dimension_semantics = [#tpu.dimension_semantics<parallel>], iteration_bounds = array<i64: 1>, scalar_prefetch = 0 : i64, scratch_operands = 0 : i64, tpu.core_type = #tpu.core_type<tc>, window_params = [{transform_indices = @transform_0, window_bounds = array<i64: 8, 32>}, {pipeline_mode = #tpu.pipeline_mode<synchronous>, transform_indices = @transform_1, window_bounds = array<i64: 32, 128>}, {pipeline_mode = #tpu.pipeline_mode<synchronous>, transform_indices = @transform_2, window_bounds = array<i64: 2, 128>}, {pipeline_mode = #tpu.pipeline_mode<synchronous>, transform_indices = @transform_3, window_bounds = array<i64: 128, 128>}, {pipeline_mode = #tpu.pipeline_mode<synchronous>, transform_indices = @transform_4, window_bounds = array<i64: 2, 128>}, {pipeline_mode = #tpu.pipeline_mode<synchronous>, transform_indices = @transform_5, window_bounds = array<i64: 128, 16>}, {pipeline_mode = #tpu.pipeline_mode<synchronous>, transform_indices = @transform_6, window_bounds = array<i64: 2, 16>}, {transform_indices = @transform_7, window_bounds = array<i64: 8, 16>}]} {
    %c0 = arith.constant 0 : index
    %c0_0 = arith.constant 0 : index
    %0 = vector.load %arg1[%c0, %c0_0] : memref<8x32xf32, #tpu.memory_space<vmem>>, vector<8x32xf32>
    %1 = arith.truncf %0 : vector<8x32xf32> to vector<8x32xbf16>
    %c0_1 = arith.constant 0 : index
    %c0_2 = arith.constant 0 : index
    %2 = vector.load %arg2[%c0_1, %c0_2] : memref<32x128xbf16, #tpu.memory_space<vmem>>, vector<32x128xbf16>
    %cst = arith.constant dense<0.000000e+00> : vector<8x128xf32>
    %3 = tpu.matmul %1, %2, %cst {dimension_numbers = #tpu.dot_dimension_numbers<[1], [0], [0], [1], [0, 0, 1, 1], [], []>} : vector<8x32xbf16>, vector<32x128xbf16>, vector<8x128xf32> -> vector<8x128xf32>
    %c0_3 = arith.constant 0 : index
    %c0_4 = arith.constant 0 : index
    %4 = vector.load %arg3[%c0_3, %c0_4] : memref<2x128xf32, #tpu.memory_space<vmem>>, vector<1x128xf32>
    %5 = vector.broadcast %4 : vector<1x128xf32> to vector<8x128xf32>
    %6 = arith.addf %3, %5 : vector<8x128xf32>
    %cst_5 = arith.constant 0.000000e+00 : f32
    %7 = vector.broadcast %cst_5 : f32 to vector<8x128xf32>
    %8 = arith.maximumf %6, %7 : vector<8x128xf32>
    %c1 = arith.constant 1 : index
    %c0_6 = arith.constant 0 : index
    %9 = vector.load %arg3[%c1, %c0_6] : memref<2x128xf32, #tpu.memory_space<vmem>>, vector<1x128xf32>
    %10 = vector.broadcast %9 : vector<1x128xf32> to vector<8x128xf32>
    %11 = arith.addf %8, %10 : vector<8x128xf32>
    %12 = arith.truncf %11 : vector<8x128xf32> to vector<8x128xbf16>
    %c0_7 = arith.constant 0 : index
    %c0_8 = arith.constant 0 : index
    %13 = vector.load %arg4[%c0_7, %c0_8] : memref<128x128xbf16, #tpu.memory_space<vmem>>, vector<128x128xbf16>
    %cst_9 = arith.constant dense<0.000000e+00> : vector<8x128xf32>
    %14 = tpu.matmul %12, %13, %cst_9 {dimension_numbers = #tpu.dot_dimension_numbers<[1], [0], [0], [1], [0, 0, 1, 1], [], []>} : vector<8x128xbf16>, vector<128x128xbf16>, vector<8x128xf32> -> vector<8x128xf32>
    %c0_10 = arith.constant 0 : index
    %c0_11 = arith.constant 0 : index
    %15 = vector.load %arg5[%c0_10, %c0_11] : memref<2x128xf32, #tpu.memory_space<vmem>>, vector<1x128xf32>
    %16 = vector.broadcast %15 : vector<1x128xf32> to vector<8x128xf32>
    %17 = arith.addf %14, %16 : vector<8x128xf32>
    %cst_12 = arith.constant 0.000000e+00 : f32
    %18 = vector.broadcast %cst_12 : f32 to vector<8x128xf32>
    %19 = arith.maximumf %17, %18 : vector<8x128xf32>
    %c1_13 = arith.constant 1 : index
    %c0_14 = arith.constant 0 : index
    %20 = vector.load %arg5[%c1_13, %c0_14] : memref<2x128xf32, #tpu.memory_space<vmem>>, vector<1x128xf32>
    %21 = vector.broadcast %20 : vector<1x128xf32> to vector<8x128xf32>
    %22 = arith.addf %19, %21 : vector<8x128xf32>
    %23 = arith.truncf %22 : vector<8x128xf32> to vector<8x128xbf16>
    %c0_15 = arith.constant 0 : index
    %c0_16 = arith.constant 0 : index
    %24 = vector.load %arg6[%c0_15, %c0_16] : memref<128x16xbf16, #tpu.memory_space<vmem>>, vector<128x16xbf16>
    %cst_17 = arith.constant dense<0.000000e+00> : vector<8x16xf32>
    %25 = tpu.matmul %23, %24, %cst_17 {dimension_numbers = #tpu.dot_dimension_numbers<[1], [0], [0], [1], [0, 0, 1, 1], [], []>} : vector<8x128xbf16>, vector<128x16xbf16>, vector<8x16xf32> -> vector<8x16xf32>
    %c0_18 = arith.constant 0 : index
    %c0_19 = arith.constant 0 : index
    %26 = vector.load %arg7[%c0_18, %c0_19] : memref<2x16xf32, #tpu.memory_space<vmem>>, vector<1x16xf32>
    %27 = vector.broadcast %26 : vector<1x16xf32> to vector<8x16xf32>
    %28 = arith.addf %25, %27 : vector<8x16xf32>
    %cst_20 = arith.constant 0.000000e+00 : f32
    %29 = vector.broadcast %cst_20 : f32 to vector<8x16xf32>
    %30 = arith.maximumf %28, %29 : vector<8x16xf32>
    %c1_21 = arith.constant 1 : index
    %c0_22 = arith.constant 0 : index
    %31 = vector.load %arg7[%c1_21, %c0_22] : memref<2x16xf32, #tpu.memory_space<vmem>>, vector<1x16xf32>
    %32 = vector.broadcast %31 : vector<1x16xf32> to vector<8x16xf32>
    %33 = arith.addf %30, %32 : vector<8x16xf32>
    %c0_23 = arith.constant 0 : index
    %c0_24 = arith.constant 0 : index
    %34 = vector.load %arg8[%c0_23, %c0_24] : memref<8x16xf32, #tpu.memory_space<vmem>>, vector<8x16xf32>
    tpu.vector_store %arg8[%c0_23, %c0_24], %33 {strides = array<i32>} : memref<8x16xf32, #tpu.memory_space<vmem>>, vector<8x16xf32>,
    return
  }
  func.func @transform_0(%arg0: i32) -> (i32, i32) {
    %c0_i32 = arith.constant 0 : i32
    %c0_i32_0 = arith.constant 0 : i32
    return %arg0, %c0_i32 : i32, i32
  }
  func.func @transform_1(%arg0: i32) -> (i32, i32) {
    %c0_i32 = arith.constant 0 : i32
    %c0_i32_0 = arith.constant 0 : i32
    %c0_i32_1 = arith.constant 0 : i32
    return %c0_i32, %c0_i32_0 : i32, i32
  }
  func.func @transform_2(%arg0: i32) -> (i32, i32) {
    %c0_i32 = arith.constant 0 : i32
    %c0_i32_0 = arith.constant 0 : i32
    %c0_i32_1 = arith.constant 0 : i32
    return %c0_i32, %c0_i32_0 : i32, i32
  }
  func.func @transform_3(%arg0: i32) -> (i32, i32) {
    %c0_i32 = arith.constant 0 : i32
    %c0_i32_0 = arith.constant 0 : i32
    %c0_i32_1 = arith.constant 0 : i32
    return %c0_i32, %c0_i32_0 : i32, i32
  }
  func.func @transform_4(%arg0: i32) -> (i32, i32) {
    %c0_i32 = arith.constant 0 : i32
    %c0_i32_0 = arith.constant 0 : i32
    %c0_i32_1 = arith.constant 0 : i32
    return %c0_i32, %c0_i32_0 : i32, i32
  }
  func.func @transform_5(%arg0: i32) -> (i32, i32) {
    %c0_i32 = arith.constant 0 : i32
    %c0_i32_0 = arith.constant 0 : i32
    %c0_i32_1 = arith.constant 0 : i32
    return %c0_i32, %c0_i32_0 : i32, i32
  }
  func.func @transform_6(%arg0: i32) -> (i32, i32) {
    %c0_i32 = arith.constant 0 : i32
    %c0_i32_0 = arith.constant 0 : i32
    %c0_i32_1 = arith.constant 0 : i32
    return %c0_i32, %c0_i32_0 : i32, i32
  }
  func.func @transform_7(%arg0: i32) -> (i32, i32) {
    %c0_i32 = arith.constant 0 : i32
    %c0_i32_0 = arith.constant 0 : i32
    return %arg0, %c0_i32 : i32, i32
  }
}

</mosaic_0001>

<llo_original>
// kernel: mlp_forward.1
$region0: #{mlp_forward.1}
  #allocation0 [shape = 'u32[]', space=smem, size = 0x4, offset = 0x4, fixed_abs, tag = 'smem constant byte address 0x4 - core index']
  #allocation1 [shape = 'u32[144,128]{1,0:T(1,128)}', space=vmem, size = 0x12000, scoped, tag = 'internal scratch']
  %s0 = inlined_call_operand.hbm [shape: f32[8,32], index: 0, kind: input, shape index: {}]
  %s1 = inlined_call_operand.vmem [shape: bf16[32,128], index: 1, kind: input, shape index: {}]
  %s2 = inlined_call_operand.vmem [shape: f32[2,128], index: 2, kind: input, shape index: {}]
  %s3 = inlined_call_operand.vmem [shape: bf16[128,128], index: 3, kind: input, shape index: {}]
  %s4 = inlined_call_operand.hbm [shape: f32[2,128], index: 4, kind: input, shape index: {}]
  %s5 = inlined_call_operand.vmem [shape: bf16[128,16], index: 5, kind: input, shape index: {}]
  %s6 = inlined_call_operand.vmem [shape: f32[2,16], index: 6, kind: input, shape index: {}]
  %s7 = inlined_call_operand.hbm [shape: f32[8,16], index: 7, kind: output, shape index: {}]
  %s8 = sld [smem:[#allocation0]]
  $region46: #{mlp_forward.1} parent=0
    _
  %s10 = ssub.s32 1, %s8
  %s11 = scalar_select 0, %s10, %s8
  $region1: #{mlp_forward.1} parent=0
    #allocation2 [shape = 'u8[4096]{0}', space=vmem, size = 0x1000, scoped, tag = 'input window, operand 0, single buffered']
    #allocation3 [shape = 's32[1]{0}', space=sflag, size = 0x4, scoped, tag = 'scoped memory for mlp_forward.1']
    #allocation4 [shape = 's32[1]{0}', space=sflag, size = 0x4, scoped, tag = 'scoped memory for mlp_forward.1']
    #allocation5 [shape = 'u8[1024]{0}', space=vmem, size = 0x400, scoped, tag = 'input window, operand 4, single buffered']
    #allocation6 [shape = 's32[1]{0}', space=sflag, size = 0x4, scoped, tag = 'scoped memory for mlp_forward.1']
    #allocation7 [shape = 'u8[4096]{0}', space=vmem, size = 0x1000, scoped, tag = 'output window, operand 0, single buffered']
    %12 = vsyncpa [#allocation3], 0
    %13 = vsyncpa [#allocation6], 0
    %14 = vsyncpa [#allocation4], 0
    // Predicated region
    $region2: #{mlp_forward.1} parent=1 // pred_check
      _
    $region3: #{mlp_forward.1} parent=1 // pred_check_branch
      %16 = sbr.rel (0) target = $region5
    $region4: #{mlp_forward.1} parent=1 // pred_region
      %s18 = ssub.s32 128, 128
      %19 = vsyncadd [#allocation3], %s18
      %s21 = sshll.u32 [#allocation2], 4
      %s22 = int_to_ptr.vmem [resolvable:$true] %s21
      %24 = dma.hbm_to_vmem [thread:$0]  %s0, 128, %s22, [#allocation3]
    $region5: #{mlp_forward.1} parent=1 // pred_fallthru
      _
    // Predicated region
    $region6: #{mlp_forward.1} parent=1 // pred_check
      _
    $region7: #{mlp_forward.1} parent=1 // pred_check_branch
      %26 = sbr.rel (0) target = $region9
    $region8: #{mlp_forward.1} parent=1 // pred_region
      _
    $region9: #{mlp_forward.1} parent=1 // pred_fallthru
      _
    // Predicated region
    $region10: #{mlp_forward.1} parent=1 // pred_check
      _
    $region11: #{mlp_forward.1} parent=1 // pred_check_branch
      %28 = sbr.rel (0) target = $region13
    $region12: #{mlp_forward.1} parent=1 // pred_region
      _
    $region13: #{mlp_forward.1} parent=1 // pred_fallthru
      _
    // Predicated region
    $region14: #{mlp_forward.1} parent=1 // pred_check
      _
    $region15: #{mlp_forward.1} parent=1 // pred_check_branch
      %30 = sbr.rel (0) target = $region17
    $region16: #{mlp_forward.1} parent=1 // pred_region
      _
    $region17: #{mlp_forward.1} parent=1 // pred_fallthru
      _
    // Predicated region
    $region18: #{mlp_forward.1} parent=1 // pred_check
      _
    $region19: #{mlp_forward.1} parent=1 // pred_check_branch
      %32 = sbr.rel (0) target = $region21
    $region20: #{mlp_forward.1} parent=1 // pred_region
      %s34 = ssub.s32 32, 32
      %35 = vsyncadd [#allocation6], %s34
      %s37 = sshll.u32 [#allocation5], 4
      %s38 = int_to_ptr.vmem [resolvable:$true] %s37
      %40 = dma.hbm_to_vmem [thread:$0]  %s4, 32, %s38, [#allocation6]
    $region21: #{mlp_forward.1} parent=1 // pred_fallthru
      _
    // Predicated region
    $region22: #{mlp_forward.1} parent=1 // pred_check
      _
    $region23: #{mlp_forward.1} parent=1 // pred_check_branch
      %42 = sbr.rel (0) target = $region25
    $region24: #{mlp_forward.1} parent=1 // pred_region
      _
    $region25: #{mlp_forward.1} parent=1 // pred_fallthru
      _
    // Predicated region
    $region26: #{mlp_forward.1} parent=1 // pred_check
      _
    $region27: #{mlp_forward.1} parent=1 // pred_check_branch
      %44 = sbr.rel (0) target = $region29
    $region28: #{mlp_forward.1} parent=1 // pred_region
      _
    $region29: #{mlp_forward.1} parent=1 // pred_fallthru
      _
    // Predicated region
    $region30: #{mlp_forward.1} parent=1 // pred_check
      _
    $region31: #{mlp_forward.1} parent=1 // pred_check_branch
      %46 = sbr.rel (0) target = $region33
    $region32: #{mlp_forward.1} parent=1 // pred_region
      %47 = dma.done [#allocation3], 128
    $region33: #{mlp_forward.1} parent=1 // pred_fallthru
      _
    // Predicated region
    $region34: #{mlp_forward.1} parent=1 // pred_check
      _
    $region35: #{mlp_forward.1} parent=1 // pred_check_branch
      %49 = sbr.rel (0) target = $region37
    $region36: #{mlp_forward.1} parent=1 // pred_region
      %50 = dma.done [#allocation6], 32
    $region37: #{mlp_forward.1} parent=1 // pred_fallthru
      _
    %v52 = vld [vmem:[#allocation2] sm:$0xff]
    %v53 = vpack.c.bf16 %v52, %v52
    %v54 = vld [vmem:[%s1] sm:$0xf]
    %v55 = vld [vmem:[%s1 + $0x4] sm:$0xf]
    %v56 = vld [vmem:[%s1 + $0x8] sm:$0xf]
    %v57 = vld [vmem:[%s1 + $0xc] sm:$0xf]
    %v58 = vld [vmem:[%s2] sm:$0x1]
    %v59 = vlaneseq
    %v60 = vshrl.u32 %v59, 7
    %v61 = vsub.s32 0, %v60
    %v62 = vrot.slane %v58, %v61
    %v67 = vunpack.c.l.b16 %v54
    %v68 = vunpack.c.l.b16 %v55
    %v69 = vunpack.c.l.b16 %v56
    %v70 = vunpack.c.l.b16 %v57
    %v71 = vpack.c.b16 %v68, %v67
    %v72 = vpack.c.b16 %v70, %v69
    %vm75 = vcmask 261120
    %v77 = vsel %vm75, %v53, 0
    %79 = vmatprep.subr.bf16.mxu0 0
    %80 = vmatpush1.bf16.msra.mxu0 %v71
    %81 = vmatprep.subr.bf16.mxu0 0
    %82 = vmatpush1.bf16.msra.mxu0 %v72
    %83 = vmatprep.subr.bf16.mxu0 0
    %84 = vmatpush1.bf16.msra.mxu0 0
    %85 = vmatprep.subr.bf16.mxu0 0
    %86 = vmatpush1.bf16.msra.mxu0 0
    %87 = vmatprep.subr.bf16.mxu0 0
    %88 = vmatpush1.bf16.msra.mxu0 0
    %89 = vmatprep.subr.bf16.mxu0 0
    %90 = vmatpush1.bf16.msra.mxu0 0
    %91 = vmatprep.subr.bf16.mxu0 0
    %92 = vmatpush1.bf16.msra.mxu0 0
    %93 = vmatprep.subr.bf16.mxu0 0
    %94 = vmatpush1.bf16.msra.mxu0 0
    %95 = vmatprep.subr.bf16.mxu0 0
    %96 = vmatpush1.bf16.msra.mxu0 0
    %97 = vmatprep.subr.bf16.mxu0 0
    %98 = vmatpush1.bf16.msra.mxu0 0
    %99 = vmatprep.subr.bf16.mxu0 0
    %100 = vmatpush1.bf16.msra.mxu0 0
    %101 = vmatprep.subr.bf16.mxu0 0
    %102 = vmatpush1.bf16.msra.mxu0 0
    %103 = vmatprep.subr.bf16.mxu0 0
    %104 = vmatpush1.bf16.msra.mxu0 0
    %105 = vmatprep.subr.bf16.mxu0 0
    %106 = vmatpush1.bf16.msra.mxu0 0
    %107 = vmatprep.subr.bf16.mxu0 0
    %108 = vmatpush1.bf16.msra.mxu0 0
    %109 = vmatprep.subr.bf16.mxu0 0
    %110 = vmatpush1.bf16.msra.mxu0 0
    %111 = vmatprep.mubr.bf16.mxu0 0
    %112 = vmatmul.mubr.bf16.gmra.mrb[0].mxu0 %v77
    %v113 = vpop.f32.mrb[0].mxu0
    %v114 = vadd.f32 %v62, %v113
    %v115 = vpop.f32.mrb[0].mxu0
    %v116 = vpop.f32.mrb[0].mxu0
    %v117 = vpop.f32.mrb[0].mxu0
    %118 = vdwg.mxu0
    %v119 = vmax.f32 %v114, 0.0
    %v120 = vld [vmem:[%s2 + $0x1] sm:$0x1]
    %v121 = vlaneseq
    %v122 = vshrl.u32 %v121, 7
    %v123 = vsub.s32 0, %v122
    %v124 = vrot.slane %v120, %v123
    %v125 = vadd.f32 %v119, %v124
    %v126 = vpack.c.bf16 %v125, %v125
    %v127 = vld [vmem:[%s3] sm:$0xf]
    %v128 = vld [vmem:[%s3 + $0x4] sm:$0xf]
    %v129 = vld [vmem:[%s3 + $0x8] sm:$0xf]
    %v130 = vld [vmem:[%s3 + $0xc] sm:$0xf]
    %v131 = vld [vmem:[%s3 + $0x10] sm:$0xf]
    %v132 = vld [vmem:[%s3 + $0x14] sm:$0xf]
    %v133 = vld [vmem:[%s3 + $0x18] sm:$0xf]
    %v134 = vld [vmem:[%s3 + $0x1c] sm:$0xf]
    %v135 = vld [vmem:[%s3 + $0x20] sm:$0xf]
    %v136 = vld [vmem:[%s3 + $0x24] sm:$0xf]
    %v137 = vld [vmem:[%s3 + $0x28] sm:$0xf]
    %v138 = vld [vmem:[%s3 + $0x2c] sm:$0xf]
    %v139 = vld [vmem:[%s3 + $0x30] sm:$0xf]
    %v140 = vld [vmem:[%s3 + $0x34] sm:$0xf]
    %v141 = vld [vmem:[%s3 + $0x38] sm:$0xf]
    %v142 = vld [vmem:[%s3 + $0x3c] sm:$0xf]
    %v143 = vld [vmem:[#allocation5] sm:$0x1]
    %v144 = vlaneseq
    %v145 = vshrl.u32 %v144, 7
    %v146 = vsub.s32 0, %v145
    %v147 = vrot.slane %v143, %v146
    %v164 = vunpack.c.l.b16 %v127
    %v165 = vunpack.c.l.b16 %v128
    %v166 = vunpack.c.l.b16 %v129
    %v167 = vunpack.c.l.b16 %v130
    %v168 = vunpack.c.l.b16 %v131
    %v169 = vunpack.c.l.b16 %v132
    %v170 = vunpack.c.l.b16 %v133
    %v171 = vunpack.c.l.b16 %v134
    %v172 = vunpack.c.l.b16 %v135
    %v173 = vunpack.c.l.b16 %v136
    %v174 = vunpack.c.l.b16 %v137
    %v175 = vunpack.c.l.b16 %v138
    %v176 = vunpack.c.l.b16 %v139
    %v177 = vunpack.c.l.b16 %v140
    %v178 = vunpack.c.l.b16 %v141
    %v179 = vunpack.c.l.b16 %v142
    %v180 = vpack.c.b16 %v165, %v164
    %v181 = vpack.c.b16 %v167, %v166
    %v182 = vpack.c.b16 %v169, %v168
    %v183 = vpack.c.b16 %v171, %v170
    %v184 = vpack.c.b16 %v173, %v172
    %v185 = vpack.c.b16 %v175, %v174
    %v186 = vpack.c.b16 %v177, %v176
    %v187 = vpack.c.b16 %v179, %v178
    %196 = vmatprep.subr.bf16.mxu0 0
    %197 = vmatpush1.bf16.msra.mxu0 %v180
    %198 = vmatprep.subr.bf16.mxu0 0
    %199 = vmatpush1.bf16.msra.mxu0 %v181
    %200 = vmatprep.subr.bf16.mxu0 0
    %201 = vmatpush1.bf16.msra.mxu0 %v182
    %202 = vmatprep.subr.bf16.mxu0 0
    %203 = vmatpush1.bf16.msra.mxu0 %v183
    %204 = vmatprep.subr.bf16.mxu0 0
    %205 = vmatpush1.bf16.msra.mxu0 %v184
    %206 = vmatprep.subr.bf16.mxu0 0
    %207 = vmatpush1.bf16.msra.mxu0 %v185
    %208 = vmatprep.subr.bf16.mxu0 0
    %209 = vmatpush1.bf16.msra.mxu0 %v186
    %210 = vmatprep.subr.bf16.mxu0 0
    %211 = vmatpush1.bf16.msra.mxu0 %v187
    %212 = vmatprep.subr.bf16.mxu0 0
    %213 = vmatpush1.bf16.msra.mxu0 0
    %214 = vmatprep.subr.bf16.mxu0 0
    %215 = vmatpush1.bf16.msra.mxu0 0
    %216 = vmatprep.subr.bf16.mxu0 0
    %217 = vmatpush1.bf16.msra.mxu0 0
    %218 = vmatprep.subr.bf16.mxu0 0
    %219 = vmatpush1.bf16.msra.mxu0 0
    %220 = vmatprep.subr.bf16.mxu0 0
    %221 = vmatpush1.bf16.msra.mxu0 0
    %222 = vmatprep.subr.bf16.mxu0 0
    %223 = vmatpush1.bf16.msra.mxu0 0
    %224 = vmatprep.subr.bf16.mxu0 0
    %225 = vmatpush1.bf16.msra.mxu0 0
    %226 = vmatprep.subr.bf16.mxu0 0
    %227 = vmatpush1.bf16.msra.mxu0 0
    %228 = vmatprep.mubr.bf16.mxu0 0
    %229 = vmatmul.mubr.bf16.gmra.mrb[0].mxu0 %v126
    %v230 = vpop.f32.mrb[0].mxu0
    %v231 = vadd.f32 %v147, %v230
    %v232 = vpop.f32.mrb[0].mxu0
    %v233 = vpop.f32.mrb[0].mxu0
    %v234 = vpop.f32.mrb[0].mxu0
    %235 = vdwg.mxu0
    %v236 = vmax.f32 %v231, 0.0
    %v237 = vld [vmem:[#allocation5 + $0x1] sm:$0x1]
    %v238 = vlaneseq
    %v239 = vshrl.u32 %v238, 7
    %v240 = vsub.s32 0, %v239
    %v241 = vrot.slane %v237, %v240
    %v242 = vadd.f32 %v236, %v241
    %v243 = vpack.c.bf16 %v242, %v242
    %v244 = vld [vmem:[%s5] sm:$0xf]
    %v245 = vld [vmem:[%s5 + $0x4] sm:$0xf]
    %v246 = vld [vmem:[%s5 + $0x8] sm:$0xf]
    %v247 = vld [vmem:[%s5 + $0xc] sm:$0xf]
    %v248 = vld [vmem:[%s5 + $0x10] sm:$0xf]
    %v249 = vld [vmem:[%s5 + $0x14] sm:$0xf]
    %v250 = vld [vmem:[%s5 + $0x18] sm:$0xf]
    %v251 = vld [vmem:[%s5 + $0x1c] sm:$0xf]
    %v252 = vld [vmem:[%s5 + $0x20] sm:$0xf]
    %v253 = vld [vmem:[%s5 + $0x24] sm:$0xf]
    %v254 = vld [vmem:[%s5 + $0x28] sm:$0xf]
    %v255 = vld [vmem:[%s5 + $0x2c] sm:$0xf]
    %v256 = vld [vmem:[%s5 + $0x30] sm:$0xf]
    %v257 = vld [vmem:[%s5 + $0x34] sm:$0xf]
    %v258 = vld [vmem:[%s5 + $0x38] sm:$0xf]
    %v259 = vld [vmem:[%s5 + $0x3c] sm:$0xf]
    %v260 = vld [vmem:[%s6] sm:$0x1]
    %v261 = vlaneseq
    %v262 = vshrl.u32 %v261, 7
    %v263 = vsub.s32 0, %v262
    %v264 = vrot.slane %v260, %v263
    %v281 = vunpack.c.l.b16 %v244
    %v282 = vunpack.c.l.b16 %v245
    %v283 = vunpack.c.l.b16 %v246
    %v284 = vunpack.c.l.b16 %v247
    %v285 = vunpack.c.l.b16 %v248
    %v286 = vunpack.c.l.b16 %v249
    %v287 = vunpack.c.l.b16 %v250
    %v288 = vunpack.c.l.b16 %v251
    %v289 = vunpack.c.l.b16 %v252
    %v290 = vunpack.c.l.b16 %v253
    %v291 = vunpack.c.l.b16 %v254
    %v292 = vunpack.c.l.b16 %v255
    %v293 = vunpack.c.l.b16 %v256
    %v294 = vunpack.c.l.b16 %v257
    %v295 = vunpack.c.l.b16 %v258
    %v296 = vunpack.c.l.b16 %v259
    %v297 = vpack.c.b16 %v282, %v281
    %v298 = vpack.c.b16 %v284, %v283
    %v299 = vpack.c.b16 %v286, %v285
    %v300 = vpack.c.b16 %v288, %v287
    %v301 = vpack.c.b16 %v290, %v289
    %v302 = vpack.c.b16 %v292, %v291
    %v303 = vpack.c.b16 %v294, %v293
    %v304 = vpack.c.b16 %v296, %v295
    %313 = vmatprep.subr.bf16.mxu0 0
    %314 = vmatpush1.bf16.msra.mxu0 %v297
    %315 = vmatprep.subr.bf16.mxu0 0
    %316 = vmatpush1.bf16.msra.mxu0 %v298
    %317 = vmatprep.subr.bf16.mxu0 0
    %318 = vmatpush1.bf16.msra.mxu0 %v299
    %319 = vmatprep.subr.bf16.mxu0 0
    %320 = vmatpush1.bf16.msra.mxu0 %v300
    %321 = vmatprep.subr.bf16.mxu0 0
    %322 = vmatpush1.bf16.msra.mxu0 %v301
    %323 = vmatprep.subr.bf16.mxu0 0
    %324 = vmatpush1.bf16.msra.mxu0 %v302
    %325 = vmatprep.subr.bf16.mxu0 0
    %326 = vmatpush1.bf16.msra.mxu0 %v303
    %327 = vmatprep.subr.bf16.mxu0 0
    %328 = vmatpush1.bf16.msra.mxu0 %v304
    %329 = vmatprep.subr.bf16.mxu0 0
    %330 = vmatpush1.bf16.msra.mxu0 0
    %331 = vmatprep.subr.bf16.mxu0 0
    %332 = vmatpush1.bf16.msra.mxu0 0
    %333 = vmatprep.subr.bf16.mxu0 0
    %334 = vmatpush1.bf16.msra.mxu0 0
    %335 = vmatprep.subr.bf16.mxu0 0
    %336 = vmatpush1.bf16.msra.mxu0 0
    %337 = vmatprep.subr.bf16.mxu0 0
    %338 = vmatpush1.bf16.msra.mxu0 0
    %339 = vmatprep.subr.bf16.mxu0 0
    %340 = vmatpush1.bf16.msra.mxu0 0
    %341 = vmatprep.subr.bf16.mxu0 0
    %342 = vmatpush1.bf16.msra.mxu0 0
    %343 = vmatprep.subr.bf16.mxu0 0
    %344 = vmatpush1.bf16.msra.mxu0 0
    %345 = vmatprep.mubr.bf16.mxu0 0
    %346 = vmatmul.mubr.bf16.gmra.mrb[0].mxu0 %v243
    %v347 = vpop.f32.mrb[0].mxu0
    %v348 = vadd.f32 %v264, %v347
    %v349 = vpop.f32.mrb[0].mxu0
    %v350 = vpop.f32.mrb[0].mxu0
    %v351 = vpop.f32.mrb[0].mxu0
    %352 = vdwg.mxu0
    %v353 = vmax.f32 %v348, 0.0
    %v354 = vld [vmem:[%s6 + $0x1] sm:$0x1]
    %v355 = vlaneseq
    %v356 = vshrl.u32 %v355, 7
    %v357 = vsub.s32 0, %v356
    %v358 = vrot.slane %v354, %v357
    %v359 = vadd.f32 %v353, %v358
    %vm360 = vcmask 130048
    %361 = vst.msk [vmem:[#allocation7] sm:$0xff] %vm360, %v359
    // Predicated region
    $region38: #{mlp_forward.1} parent=1 // pred_check
      _
    $region39: #{mlp_forward.1} parent=1 // pred_check_branch
      %363 = sbr.rel (0) target = $region41
    $region40: #{mlp_forward.1} parent=1 // pred_region
      %s365 = ssub.s32 128, 128
      %366 = vsyncadd [#allocation4], %s365
      %s368 = sshll.u32 [#allocation7], 4
      %s369 = int_to_ptr.vmem [resolvable:$true] %s368
      %371 = dma.vmem_to_hbm [thread:$0]  %s369, 128, %s7, [#allocation4]
    $region41: #{mlp_forward.1} parent=1 // pred_fallthru
      _
    // Predicated region
    $region42: #{mlp_forward.1} parent=1 // pred_check
      _
    $region43: #{mlp_forward.1} parent=1 // pred_check_branch
      %373 = sbr.rel (0) target = $region45
    $region44: #{mlp_forward.1} parent=1 // pred_region
      %374 = dma.done [#allocation4], 128
    $region45: #{mlp_forward.1} parent=1 // pred_fallthru
      _
    %375 = vsyncpa [#allocation3], 1
    %376 = vsyncpa [#allocation6], 1
    %377 = vsyncpa [#allocation4], 1

</llo_original>
